<compile_context>
chip_gen: v7x
topology: tpu7x:2x2x1
jax: 0.10.0
libtpu: 0.0.40
codegen_flags: <defaults>
</compile_context>

<pallas_src>
import functools

import jax
import jax.numpy as jnp
from jax import lax
from jax.experimental import pallas as pl
from jax.experimental.pallas import tpu as pltpu


# ------------------------------ tiling helper ------------------------------ #

def _pick_tile(dim, pref, align):
    """Largest tile <= pref that divides dim and is a multiple of align; else full dim."""
    if dim <= pref:
        return dim
    t = (pref // align) * align
    while t >= align:
        if dim % t == 0:
            return t
        t -= align
    return dim


# ----------------------- fused linear (+res +LN) kernel --------------------- #

def _make_linear_kernel(activation, has_residual, fuse_ln, eps):
    def kernel(x_ref, w_ref, b_ref, *rest):
        idx = 0
        res_ref = rest[idx] if has_residual else None
        idx += 1 if has_residual else 0
        g_ref = rest[idx] if fuse_ln else None
        beta_ref = rest[idx + 1] if fuse_ln else None
        idx += 2 if fuse_ln else 0
        o_ref = rest[idx]
        acc_ref = rest[idx + 1]

        k = pl.program_id(2)

        @pl.when(k == 0)
        def _():
            acc_ref[...] = jnp.zeros_like(acc_ref)

        # bf16 x bf16 -> f32 accumulate on the MXU.
        acc_ref[...] += jnp.dot(x_ref[...], w_ref[...],
                                preferred_element_type=jnp.float32)

        @pl.when(k == pl.num_programs(2) - 1)
        def _():
            y = acc_ref[...] + b_ref[...].astype(jnp.float32)
            if activation == "gelu":
                # TODO(synk): HF/PyTorch BERT uses exact erf GELU; tanh approximation
                # is used here to guarantee a clean Mosaic lowering.
                y = jax.nn.gelu(y, approximate=True)
            if has_residual:
                y = y + res_ref[...].astype(jnp.float32)
            if fuse_ln:
                mu = jnp.mean(y, axis=-1, keepdims=True)
                var = jnp.mean(jnp.square(y - mu), axis=-1, keepdims=True)
                y = (y - mu) * lax.rsqrt(var + eps)
                y = (y * g_ref[...].astype(jnp.float32)
                     + beta_ref[...].astype(jnp.float32))
            o_ref[...] = y.astype(o_ref.dtype)

    return kernel


def linear(x, w, b, *, activation=None, residual=None, ln=None,
           eps=1e-12, out_dtype=None):
    """y = act(x @ w + b) [+ residual] [-> LayerNorm], tiled over (N, O, K)."""
    N, K = x.shape
    Kw, O = w.shape
    assert K == Kw
    out_dtype = out_dtype or x.dtype
    fuse_ln = ln is not None
    has_res = residual is not None

    # VMEM-friendly tiles (modest sizes so the config also fits v7x's 64 MiB VMEM
    # with double buffering). LayerNorm fusion needs the full output row per block.
    tm = _pick_tile(N, 256, 8)
    tn = O if fuse_ln else _pick_tile(O, 512, 128)
    tk = _pick_tile(K, 512, 128)
    grid = (N // tm, O // tn, K // tk)

    in_specs = [
        pl.BlockSpec((tm, tk), lambda i, j, k: (i, k)),
        pl.BlockSpec((tk, tn), lambda i, j, k: (k, j)),
        pl.BlockSpec((1, tn), lambda i, j, k: (0, j)),
    ]
    args = [x, w, b.reshape(1, O)]
    if has_res:
        in_specs.append(pl.BlockSpec((tm, tn), lambda i, j, k: (i, j)))
        args.append(residual)
    if fuse_ln:
        g, beta = ln
        in_specs += [pl.BlockSpec((1, tn), lambda i, j, k: (0, j)),
                     pl.BlockSpec((1, tn), lambda i, j, k: (0, j))]
        args += [g.reshape(1, O), beta.reshape(1, O)]

    return pl.pallas_call(
        _make_linear_kernel(activation, has_res, fuse_ln, eps),
        out_shape=jax.ShapeDtypeStruct((N, O), out_dtype),
        grid=grid,
        in_specs=in_specs,
        out_specs=pl.BlockSpec((tm, tn), lambda i, j, k: (i, j)),
        scratch_shapes=[pltpu.VMEM((tm, tn), jnp.float32)],
        compiler_params=pltpu.CompilerParams(
            dimension_semantics=("parallel", "parallel", "arbitrary")),
    )(*args)


# --------------------------- standalone layer norm -------------------------- #

def _layernorm_kernel(x_ref, g_ref, b_ref, o_ref, *, eps):
    x = x_ref[...].astype(jnp.float32)
    mu = jnp.mean(x, axis=-1, keepdims=True)
    var = jnp.mean(jnp.square(x - mu), axis=-1, keepdims=True)
    y = (x - mu) * lax.rsqrt(var + eps)
    o_ref[...] = (y * g_ref[...] + b_ref[...]).astype(o_ref.dtype)


def layer_norm(x, g, b, eps=1e-12, out_dtype=None):
    N, H = x.shape
    tm = _pick_tile(N, 512, 8)
    return pl.pallas_call(
        functools.partial(_layernorm_kernel, eps=eps),
        out_shape=jax.ShapeDtypeStruct((N, H), out_dtype or x.dtype),
        grid=(N // tm,),
        in_specs=[pl.BlockSpec((tm, H), lambda i: (i, 0)),
                  pl.BlockSpec((1, H), lambda i: (0, 0)),
                  pl.BlockSpec((1, H), lambda i: (0, 0))],
        out_specs=pl.BlockSpec((tm, H), lambda i: (i, 0)),
        compiler_params=pltpu.CompilerParams(dimension_semantics=("parallel",)),
    )(x, g.reshape(1, H), b.reshape(1, H))


# ------------------------------ attention kernel ---------------------------- #

def _attention_kernel(q_ref, k_ref, v_ref, o_ref, *, nh, dh, scale):
    # One batch element per grid step; block is (1, S, H) so loads/stores stay
    # lane-dense (last dim = H). Heads are split with static slices in VMEM.
    q = q_ref[0]
    k = k_ref[0]
    v = v_ref[0]
    ctx = []
    for h in range(nh):
        lo, hi = h * dh, (h + 1) * dh
        qh, kh, vh = q[:, lo:hi], k[:, lo:hi], v[:, lo:hi]
        # q @ k^T without materializing k.T (transposed contraction).
        s = lax.dot_general(qh, kh, (((1,), (1,)), ((), ())),
                            preferred_element_type=jnp.float32) * scale
        s = s - jnp.max(s, axis=-1, keepdims=True)
        p = jnp.exp(s)
        p = p * pl.reciprocal(jnp.sum(p, axis=-1, keepdims=True), approx=True)
        ctx.append(jnp.dot(p.astype(vh.dtype), vh,
                           preferred_element_type=jnp.float32))
    o_ref[0] = jnp.concatenate(ctx, axis=-1).astype(o_ref.dtype)


def attention(q, k, v, nh):
    # TODO(synk): attention_mask (padding mask) is not applied; the module is
    # exercised with attention_mask=None below.
    # TODO(synk): for long sequences (S >~ 1-2k) switch to a flash-style
    # streaming kernel with a KV grid axis and online softmax.
    B, S, H = q.shape
    dh = H // nh
    scale = 1.0 / float(dh) ** 0.5
    return pl.pallas_call(
        functools.partial(_attention_kernel, nh=nh, dh=dh, scale=scale),
        out_shape=jax.ShapeDtypeStruct((B, S, H), q.dtype),
        grid=(B,),
        in_specs=[pl.BlockSpec((1, S, H), lambda b: (b, 0, 0))] * 3,
        out_specs=pl.BlockSpec((1, S, H), lambda b: (b, 0, 0)),
        compiler_params=pltpu.CompilerParams(dimension_semantics=("parallel",)),
    )(q, k, v)


# ------------------------------ Model (glue) ------------------------------- #

class Config:
    vocab_size = 64
    hidden_size = 32
    num_hidden_layers = 2
    num_attention_heads = 4
    intermediate_size = 64
    max_position_embeddings = 32
    type_vocab_size = 2
    layer_norm_eps = 1e-12


QA_PAD = 128  # pad the 2-wide QA head to a lane-dense 128-wide output


def init_params(key, cfg):
    keys = iter(jax.random.split(key, 256))

    def nrm(shape, scale=0.02):
        return (scale * jax.random.normal(next(keys), shape)).astype(jnp.float32)

    H, I = cfg.hidden_size, cfg.intermediate_size

    qa_w = nrm((H, 2))
    qa_w_pad = jnp.zeros((H, QA_PAD), jnp.float32).at[:, :2].set(qa_w)
    qa_b_pad = jnp.zeros((QA_PAD,), jnp.float32)

    params = {
        "word_emb": nrm((cfg.vocab_size, H)),
        "pos_emb": nrm((cfg.max_position_embeddings, H)),
        "type_emb": nrm((cfg.type_vocab_size, H)),
        "emb_ln_g": jnp.ones((H,), jnp.float32),
        "emb_ln_b": jnp.zeros((H,), jnp.float32),
        "layers": [],
        "qa_w": qa_w_pad.astype(jnp.bfloat16),
        "qa_b": qa_b_pad,
    }
    for _ in range(cfg.num_hidden_layers):
        wq, wk, wv = nrm((H, H)), nrm((H, H)), nrm((H, H))
        params["layers"].append({
            # fused QKV projection
            "wqkv": jnp.concatenate([wq, wk, wv], axis=1).astype(jnp.bfloat16),
            "bqkv": jnp.zeros((3 * H,), jnp.float32),
            "wo": nrm((H, H)).astype(jnp.bfloat16), "bo": jnp.zeros((H,), jnp.float32),
            "ln1_g": jnp.ones((H,), jnp.float32), "ln1_b": jnp.zeros((H,), jnp.float32),
            "w1": nrm((H, I)).astype(jnp.bfloat16), "b1": jnp.zeros((I,), jnp.float32),
            "w2": nrm((I, H)).astype(jnp.bfloat16), "b2": jnp.zeros((H,), jnp.float32),
            "ln2_g": jnp.ones((H,), jnp.float32), "ln2_b": jnp.zeros((H,), jnp.float32),
        })
    return params


def encoder_layer(x2d, p, cfg, B, S):
    H = cfg.hidden_size
    nh = cfg.num_attention_heads

    # fused Q/K/V projection: one read of x2d, one (H, 3H) matmul.
    qkv = linear(x2d, p["wqkv"], p["bqkv"])                     # [B*S, 3H] bf16
    q = qkv[:, :H].reshape(B, S, H)
    k = qkv[:, H:2 * H].reshape(B, S, H)
    v = qkv[:, 2 * H:].reshape(B, S, H)

    ctx = attention(q, k, v, nh).reshape(B * S, H)

    # output projection + residual + LayerNorm fused in one kernel epilogue.
    x2d = linear(ctx, p["wo"], p["bo"], residual=x2d,
                 ln=(p["ln1_g"], p["ln1_b"]), eps=cfg.layer_norm_eps)

    h1 = linear(x2d, p["w1"], p["b1"], activation="gelu")
    x2d = linear(h1, p["w2"], p["b2"], residual=x2d,
                 ln=(p["ln2_g"], p["ln2_b"]), eps=cfg.layer_norm_eps)
    return x2d


def _cross_entropy(logits, targets, ignore_index):
    # logits: [B, C], targets: [B]; mean over non-ignored targets (PyTorch semantics).
    logz = jax.nn.logsumexp(logits, axis=-1)
    safe_t = jnp.where(targets == ignore_index, 0, targets)
    picked = jnp.take_along_axis(logits, safe_t[:, None], axis=-1)[:, 0]
    nll = logz - picked
    mask = (targets != ignore_index).astype(logits.dtype)
    return jnp.sum(nll * mask) / jnp.maximum(jnp.sum(mask), 1.0)


def bert_for_mrc_forward(params, cfg, input_ids, attention_mask=None,
                         token_type_id=None, position_ids=None,
                         start_position=None, end_position=None):
    S, B = input_ids.shape
    H = cfg.hidden_size

    if token_type_id is None:
        token_type_id = jnp.zeros_like(input_ids)
    if position_ids is None:
        position_ids = jnp.broadcast_to(jnp.arange(S)[:, None], (S, B))

    emb = (params["word_emb"][input_ids]
           + params["pos_emb"][position_ids]
           + params["type_emb"][token_type_id])                # [S, B, H] f32
    emb = jnp.transpose(emb, (1, 0, 2)).reshape(B * S, H)      # batch-first slab
    x2d = layer_norm(emb, params["emb_ln_g"], params["emb_ln_b"],
                     cfg.layer_norm_eps, out_dtype=jnp.bfloat16)

    all_encoder_outputs = []
    for lp in params["layers"]:
        x2d = encoder_layer(x2d, lp, cfg, B, S)
        all_encoder_outputs.append(x2d)

    sequence_output = all_encoder_outputs[-1]                  # [B*S, H] bf16

    # QA head: padded to 128 lanes for a dense store; real logits are cols 0/1.
    logits = linear(sequence_output, params["qa_w"], params["qa_b"],
                    out_dtype=jnp.float32).reshape(B, S, QA_PAD)
    start_logits = logits[..., 0]                              # [B, S]
    end_logits = logits[..., 1]                                # [B, S]

    if start_position is not None and end_position is not None:
        ignore_index = start_logits.shape[1]
        start_position = jnp.clip(start_position, 0, ignore_index)
        end_position = jnp.clip(end_position, 0, ignore_index)
        start_loss = _cross_entropy(start_logits, start_position, ignore_index)
        end_loss = _cross_entropy(end_logits, end_position, ignore_index)
        return (start_loss + end_loss) / 2.0, start_logits, end_logits
    return start_logits, end_logits


# ---------------------------------- Main ----------------------------------- #

if __name__ == "__main__":
    cfg = Config()
    S, B = 8, 2  # seq_len, batch

    key = jax.random.PRNGKey(0)
    k_params, k_ids = jax.random.split(key)
    params = init_params(k_params, cfg)
    input_ids = jax.random.randint(k_ids, (S, B), 0, cfg.vocab_size, dtype=jnp.int32)

    start_logits, end_logits = bert_for_mrc_forward(params, cfg, input_ids)
    jax.block_until_ready((start_logits, end_logits))

    assert start_logits.shape == (B, S) and end_logits.shape == (B, S)
    assert bool(jnp.all(jnp.isfinite(start_logits))) and bool(jnp.all(jnp.isfinite(end_logits)))
    print("KERNEL_OK")
</pallas_src>

<mosaic_0001>
module attributes {stable_mosaic.version = 11 : i64} {
  func.func @_layernorm_kernel(%arg0: i32, %arg1: memref<16x32xf32, #tpu.memory_space<vmem>>, %arg2: memref<1x32xf32, #tpu.memory_space<vmem>>, %arg3: memref<1x32xf32, #tpu.memory_space<vmem>>, %arg4: memref<16x32xbf16, #tpu.memory_space<vmem>>) attributes {dimension_semantics = [#tpu.dimension_semantics<parallel>], iteration_bounds = array<i64: 1>, scalar_prefetch = 0 : i64, scratch_operands = 0 : i64, tpu.core_type = #tpu.core_type<tc>, window_params = [{transform_indices = @transform_0, window_bounds = array<i64: 16, 32>}, {pipeline_mode = #tpu.pipeline_mode<synchronous>, transform_indices = @transform_1, window_bounds = array<i64: 1, 32>}, {pipeline_mode = #tpu.pipeline_mode<synchronous>, transform_indices = @transform_2, window_bounds = array<i64: 1, 32>}, {transform_indices = @transform_3, window_bounds = array<i64: 16, 32>}]} {
    %c0 = arith.constant 0 : index
    %c0_0 = arith.constant 0 : index
    %0 = vector.load %arg1[%c0, %c0_0] : memref<16x32xf32, #tpu.memory_space<vmem>>, vector<16x32xf32>
    %cst = arith.constant dense<0.000000e+00> : vector<16xf32>
    %1 = vector.multi_reduction <add>, %0, %cst [1] : vector<16x32xf32> to vector<16xf32>
    %2 = vector.shape_cast %1 : vector<16xf32> to vector<16x1xf32>
    %cst_1 = arith.constant 3.200000e+01 : f32
    %3 = vector.broadcast %cst_1 : f32 to vector<16x1xf32>
    %4 = arith.divf %2, %3 : vector<16x1xf32>
    %5 = vector.broadcast %4 : vector<16x1xf32> to vector<16x32xf32>
    %6 = arith.subf %0, %5 : vector<16x32xf32>
    %7 = arith.mulf %6, %6 : vector<16x32xf32>
    %cst_2 = arith.constant dense<0.000000e+00> : vector<16xf32>
    %8 = vector.multi_reduction <add>, %7, %cst_2 [1] : vector<16x32xf32> to vector<16xf32>
    %9 = vector.shape_cast %8 : vector<16xf32> to vector<16x1xf32>
    %cst_3 = arith.constant 3.200000e+01 : f32
    %10 = vector.broadcast %cst_3 : f32 to vector<16x1xf32>
    %11 = arith.divf %9, %10 : vector<16x1xf32>
    %12 = vector.broadcast %4 : vector<16x1xf32> to vector<16x32xf32>
    %13 = arith.subf %0, %12 : vector<16x32xf32>
    %cst_4 = arith.constant 9.99999996E-13 : f32
    %14 = vector.broadcast %cst_4 : f32 to vector<16x1xf32>
    %15 = arith.addf %11, %14 : vector<16x1xf32>
    %16 = math.rsqrt %15 : vector<16x1xf32>
    %17 = vector.broadcast %16 : vector<16x1xf32> to vector<16x32xf32>
    %18 = arith.mulf %13, %17 : vector<16x32xf32>
    %c0_5 = arith.constant 0 : index
    %c0_6 = arith.constant 0 : index
    %19 = vector.load %arg2[%c0_5, %c0_6] : memref<1x32xf32, #tpu.memory_space<vmem>>, vector<1x32xf32>
    %20 = vector.broadcast %19 : vector<1x32xf32> to vector<16x32xf32>
    %21 = arith.mulf %18, %20 : vector<16x32xf32>
    %c0_7 = arith.constant 0 : index
    %c0_8 = arith.constant 0 : index
    %22 = vector.load %arg3[%c0_7, %c0_8] : memref<1x32xf32, #tpu.memory_space<vmem>>, vector<1x32xf32>
    %23 = vector.broadcast %22 : vector<1x32xf32> to vector<16x32xf32>
    %24 = arith.addf %21, %23 : vector<16x32xf32>
    %25 = arith.truncf %24 : vector<16x32xf32> to vector<16x32xbf16>
    %c0_9 = arith.constant 0 : index
    %c0_10 = arith.constant 0 : index
    %26 = vector.load %arg4[%c0_9, %c0_10] : memref<16x32xbf16, #tpu.memory_space<vmem>>, vector<16x32xbf16>
    tpu.vector_store %arg4[%c0_9, %c0_10], %25 {strides = array<i32>} : memref<16x32xbf16, #tpu.memory_space<vmem>>, vector<16x32xbf16>,
    return
  }
  func.func @transform_0(%arg0: i32) -> (i32, i32) {
    %c0_i32 = arith.constant 0 : i32
    %c0_i32_0 = arith.constant 0 : i32
    return %arg0, %c0_i32 : i32, i32
  }
  func.func @transform_1(%arg0: i32) -> (i32, i32) {
    %c0_i32 = arith.constant 0 : i32
    %c0_i32_0 = arith.constant 0 : i32
    %c0_i32_1 = arith.constant 0 : i32
    return %c0_i32, %c0_i32_0 : i32, i32
  }
  func.func @transform_2(%arg0: i32) -> (i32, i32) {
    %c0_i32 = arith.constant 0 : i32
    %c0_i32_0 = arith.constant 0 : i32
    %c0_i32_1 = arith.constant 0 : i32
    return %c0_i32, %c0_i32_0 : i32, i32
  }
  func.func @transform_3(%arg0: i32) -> (i32, i32) {
    %c0_i32 = arith.constant 0 : i32
    %c0_i32_0 = arith.constant 0 : i32
    return %arg0, %c0_i32 : i32, i32
  }
}

</mosaic_0001>

<llo_original>
// kernel: tpu_custom_call.1
$region0: #{tpu_custom_call.1}
  #allocation0 [shape = 'u32[]', space=smem, size = 0x4, offset = 0x4, fixed_abs, tag = 'smem constant byte address 0x4 - core index']
  #allocation1 [shape = 'u32[144,128]{1,0:T(1,128)}', space=vmem, size = 0x12000, scoped, tag = 'internal scratch']
  %s0 = inlined_call_operand.hbm [shape: f32[16,32], index: 0, kind: input, shape index: {}]
  %s1 = inlined_call_operand.vmem [shape: f32[1,32], index: 1, kind: input, shape index: {}]
  %s2 = inlined_call_operand.vmem [shape: f32[1,32], index: 2, kind: input, shape index: {}]
  %s3 = inlined_call_operand.hbm [shape: bf16[16,32], index: 3, kind: output, shape index: {}]
  %s4 = sld [smem:[#allocation0]]
  $region26: #{tpu_custom_call.1} parent=0
    _
  %s6 = ssub.s32 1, %s4
  %s7 = scalar_select 0, %s6, %s4
  $region1: #{tpu_custom_call.1} parent=0
    #allocation2 [shape = 'u8[8192]{0}', space=vmem, size = 0x2000, scoped, tag = 'input window, operand 0, single buffered']
    #allocation3 [shape = 's32[1]{0}', space=sflag, size = 0x4, scoped, tag = 'scoped memory for tpu_custom_call.1']
    #allocation4 [shape = 's32[1]{0}', space=sflag, size = 0x4, scoped, tag = 'scoped memory for tpu_custom_call.1']
    #allocation5 [shape = 'u8[4096]{0}', space=vmem, size = 0x1000, scoped, tag = 'output window, operand 0, single buffered']
    %8 = vsyncpa [#allocation3], 0
    %9 = vsyncpa [#allocation4], 0
    // Predicated region
    $region2: #{tpu_custom_call.1} parent=1 // pred_check
      _
    $region3: #{tpu_custom_call.1} parent=1 // pred_check_branch
      %11 = sbr.rel (0) target = $region5
    $region4: #{tpu_custom_call.1} parent=1 // pred_region
      %s13 = ssub.s32 256, 256
      %14 = vsyncadd [#allocation3], %s13
      %s15 = sshll.u32 [#allocation2], 4
      %s16 = int_to_ptr.vmem [resolvable:$true] %s15
      %21 = dma.hbm_to_vmem [thread:$0]  %s0, 256, %s16, [#allocation3], 128, 128, 8
    $region5: #{tpu_custom_call.1} parent=1 // pred_fallthru
      _
    // Predicated region
    $region6: #{tpu_custom_call.1} parent=1 // pred_check
      _
    $region7: #{tpu_custom_call.1} parent=1 // pred_check_branch
      %23 = sbr.rel (0) target = $region9
    $region8: #{tpu_custom_call.1} parent=1 // pred_region
      _
    $region9: #{tpu_custom_call.1} parent=1 // pred_fallthru
      _
    // Predicated region
    $region10: #{tpu_custom_call.1} parent=1 // pred_check
      _
    $region11: #{tpu_custom_call.1} parent=1 // pred_check_branch
      %25 = sbr.rel (0) target = $region13
    $region12: #{tpu_custom_call.1} parent=1 // pred_region
      _
    $region13: #{tpu_custom_call.1} parent=1 // pred_fallthru
      _
    // Predicated region
    $region14: #{tpu_custom_call.1} parent=1 // pred_check
      _
    $region15: #{tpu_custom_call.1} parent=1 // pred_check_branch
      %27 = sbr.rel (0) target = $region17
    $region16: #{tpu_custom_call.1} parent=1 // pred_region
      %28 = dma.done [#allocation3], 256
    $region17: #{tpu_custom_call.1} parent=1 // pred_fallthru
      _
    %v29 = vld [vmem:[#allocation2] sm:$0xff]
    %v30 = vld [vmem:[#allocation2 + $0x8] sm:$0xff]
    %vm31 = vcmask 261120
    %v32 = vsel %vm31, %v29, 0.0
    %33 = vadd.xlane.f32.xlu0 %v32
    %v34 = vpop.xlane.xlu0 %33
    %v35 = vsel %vm31, %v30, 0.0
    %36 = vadd.xlane.f32.xlu0 %v35
    %v37 = vpop.xlane.xlu0 %36
    %v38 = vrcp.pop 32.0
    %v39 = vmul.f32 %v34, %v38
    %v40 = vmul.f32 %v37, %v38
    %v41 = vsub.f32 %v29, %v39
    %v42 = vsub.f32 %v30, %v40
    %v43 = vmul.f32 %v41, %v41
    %v44 = vmul.f32 %v42, %v42
    %v45 = vsel %vm31, %v43, 0.0
    %46 = vadd.xlane.f32.xlu0 %v45
    %v47 = vpop.xlane.xlu0 %46
    %v48 = vsel %vm31, %v44, 0.0
    %49 = vadd.xlane.f32.xlu0 %v48
    %v50 = vpop.xlane.xlu0 %49
    %v51 = vmul.f32 %v47, %v38
    %v52 = vmul.f32 %v50, %v38
    %v53 = vadd.f32 %v51, 1e-12
    %v54 = vadd.f32 %v52, 1e-12
    %v55 = vrsqrt.pop %v53
    %v56 = vrsqrt.pop %v54
    %v57 = vmul.f32 %v41, %v55
    %v58 = vmul.f32 %v42, %v56
    %v59 = vld [vmem:[%s1] sm:$0x1]
    %v61 = vlaneseq
    %v62 = vshrl.u32 %v61, 7
    %v63 = vsub.s32 0, %v62
    %v64 = vrot.slane %v59, %v63
    %v66 = vmul.f32 %v57, %v64
    %v67 = vmul.f32 %v58, %v64
    %v68 = vld [vmem:[%s2] sm:$0x1]
    %v70 = vlaneseq
    %v71 = vshrl.u32 %v70, 7
    %v72 = vsub.s32 0, %v71
    %v73 = vrot.slane %v68, %v72
    %v75 = vadd.f32 %v66, %v73
    %v76 = vadd.f32 %v67, %v73
    %v77 = vpack.c.bf16 %v76, %v75
    %v79 = vunpack.c.l.b16 %v77
    %v80 = vunpack.c.h.b16 %v77
    %v81 = vpack.c.b16 %v79, %v79
    %v82 = vpack.c.b16 %v80, %v80
    %vm85 = vcmask 257024
    %86 = vst.msk [vmem:[#allocation5] sm:$0xf] %vm85, %v81
    %87 = vst.msk [vmem:[#allocation5 + $0x4] sm:$0xf] %vm85, %v82
    // Predicated region
    $region18: #{tpu_custom_call.1} parent=1 // pred_check
      _
    $region19: #{tpu_custom_call.1} parent=1 // pred_check_branch
      %89 = sbr.rel (0) target = $region21
    $region20: #{tpu_custom_call.1} parent=1 // pred_region
      %s91 = ssub.s32 128, 128
      %92 = vsyncadd [#allocation4], %s91
      %s93 = sshll.u32 [#allocation5], 4
      %s94 = int_to_ptr.vmem [resolvable:$true] %s93
      %99 = dma.vmem_to_hbm [thread:$0]  %s94, 128, %s3, [#allocation4], 64, 64, 4
    $region21: #{tpu_custom_call.1} parent=1 // pred_fallthru
      _
    // Predicated region
    $region22: #{tpu_custom_call.1} parent=1 // pred_check
      _
    $region23: #{tpu_custom_call.1} parent=1 // pred_check_branch
      %101 = sbr.rel (0) target = $region25
    $region24: #{tpu_custom_call.1} parent=1 // pred_region
      %102 = dma.done [#allocation4], 128
    $region25: #{tpu_custom_call.1} parent=1 // pred_fallthru
      _
    %103 = vsyncpa [#allocation3], 1
    %104 = vsyncpa [#allocation4], 1

</llo_original>
